<compile_context>
chip_gen: v7x
topology: tpu7x:2x2x1
jax: 0.10.0
libtpu: 0.0.40
codegen_flags: <defaults>
</compile_context>

<pallas_src>
import functools

import jax
import jax.numpy as jnp
import numpy as np
from jax import lax
from jax.experimental import pallas as pl
from jax.experimental.pallas import tpu as pltpu


def _round_up(x, m):
    return ((x + m - 1) // m) * m


def _pad_gate_cols(w, h, hp):
    """Pad each of the 3 gate blocks along the last axis from h to hp lanes."""
    parts = jnp.split(w, 3, axis=-1)
    pad = [(0, 0)] * (w.ndim - 1) + [(0, hp - h)]
    return jnp.concatenate([jnp.pad(p, pad) for p in parts], axis=-1)


def _pick_chunk_t(seq_len, batch_p, hp, vmem_budget_bytes=8 * 1024 * 1024):
    """Pick the per-grid-step sequence chunk so streamed VMEM stays bounded.

    Per-timestep streamed bytes in the recurrence kernel: double-buffered gi
    input chunk (3*Hp f32) + double-buffered output chunk (Hp f32), per padded
    batch row.  Budget is deliberately small (default 8 MiB) so the same
    choice fits comfortably inside v7x's 64 MiB VMEM as well as v5e/v6e's
    128 MiB, with headroom for the (constant) weight blocks.
    """
    per_t = batch_p * 4 * (3 * hp + hp) * 2
    chunk = max(1, vmem_budget_bytes // per_t)
    return int(min(chunk, max(seq_len, 1), 64))


# --------------------------------------------------------------------------
# Kernel 1: input projection  gi = x @ W_ih + b_ih_folded   (parallel, MXU)
# --------------------------------------------------------------------------
def _gi_projection_kernel(x_ref, wih_ref, bih_ref, gi_ref):
    """x_ref: (rows_chunk, E) [f32 or bf16]; wih_ref: (E, 3*Hp) [same dtype];
    bih_ref: (1, 3*Hp) f32; gi_ref: (rows_chunk, 3*Hp) f32."""
    gi_ref[...] = (
        jnp.dot(x_ref[...], wih_ref[...], preferred_element_type=jnp.float32)
        + bih_ref[...]
    )


def gi_projection(x2d, w_ih_p, b_ih_p, *, rows_chunk):
    rows, e = x2d.shape
    three_hp = w_ih_p.shape[1]
    assert rows % rows_chunk == 0
    return pl.pallas_call(
        _gi_projection_kernel,
        out_shape=jax.ShapeDtypeStruct((rows, three_hp), jnp.float32),
        grid=(rows // rows_chunk,),
        in_specs=[
            pl.BlockSpec((rows_chunk, e), lambda i: (i, 0)),
            pl.BlockSpec((e, three_hp), lambda i: (0, 0)),
            pl.BlockSpec((1, three_hp), lambda i: (0, 0)),
        ],
        out_specs=pl.BlockSpec((rows_chunk, three_hp), lambda i: (i, 0)),
        compiler_params=pltpu.CompilerParams(
            dimension_semantics=("parallel",),
        ),
    )(x2d, w_ih_p, b_ih_p)


# --------------------------------------------------------------------------
# Kernel 2: GRU recurrence over sequence chunks (serial, latency-bound)
# --------------------------------------------------------------------------
def _gru_recurrence_kernel(gi_ref, whh_ref, bhn_ref, out_ref, h_ref,
                           *, chunk_t, batch_p):
    """One grid step = `chunk_t` timesteps of the recurrence.

    gi_ref  : (chunk_t*Bp, 3*Hp) f32  precomputed input projection (streamed)
    whh_ref : (Hp, 3*Hp)              hidden->hidden weights (f32 or bf16)
    bhn_ref : (1, Hp) f32             hidden bias of the n gate
    out_ref : (chunk_t*Bp, Hp) f32    hidden state for each timestep (streamed)
    h_ref   : VMEM (Bp, Hp) f32       hidden-state carry across grid steps
    """
    hp = whh_ref.shape[0]

    @pl.when(pl.program_id(0) == 0)
    def _():
        h_ref[...] = jnp.zeros_like(h_ref)   # h0 = 0 (initialize_hidden_state)

    b_hn = bhn_ref[...]                      # (1, Hp)

    def step(t, h):
        row = pl.multiple_of(t * batch_p, batch_p)
        gi = gi_ref[pl.ds(row, batch_p), :]                       # (Bp, 3Hp)
        # Re-read W_hh from its VMEM ref each step (no giant hoisted live
        # range); cast h to the matmul dtype, accumulate in f32.
        # TODO(synk): hold W_hh in MXU weight registers across steps via
        # pltpu.matmul_push_rhs / matmul_acc_lhs / matmul_pop.
        gh = jnp.dot(h.astype(whh_ref.dtype), whh_ref[...],
                     preferred_element_type=jnp.float32)          # (Bp, 3Hp)

        i_r, i_z, i_n = gi[:, 0:hp], gi[:, hp:2 * hp], gi[:, 2 * hp:3 * hp]
        h_r, h_z, h_n = gh[:, 0:hp], gh[:, hp:2 * hp], gh[:, 2 * hp:3 * hp]

        r = jax.nn.sigmoid(i_r + h_r)        # (r, z) biases already folded into gi
        z = jax.nn.sigmoid(i_z + h_z)
        n = jnp.tanh(i_n + r * (h_n + b_hn))
        h_new = (1.0 - z) * n + z * h

        out_ref[pl.ds(row, batch_p), :] = h_new
        return h_new

    # Bounded unroll: chunk_t is already small, cap static unroll at 8.
    h_ref[...] = lax.fori_loop(0, chunk_t, step, h_ref[...],
                               unroll=min(8, chunk_t))


def gru_recurrence(gi, w_hh_p, b_hn_p, *, chunk_t, batch_p):
    rows, three_hp = gi.shape
    hp = w_hh_p.shape[0]
    assert three_hp == 3 * hp
    rows_chunk = chunk_t * batch_p
    assert rows % rows_chunk == 0
    n_chunks = rows // rows_chunk

    kernel = functools.partial(_gru_recurrence_kernel,
                               chunk_t=chunk_t, batch_p=batch_p)
    # TODO(synk): mark the constant weight/bias specs pipeline_mode=Buffered(1)
    # (no double-buffering) to reclaim VMEM on v7x (64 MiB).
    # TODO(synk): on v7x add a leading "parallel" batch-shard grid axis so the
    # two TensorCores each run an independent batch shard of the recurrence.
    return pl.pallas_call(
        kernel,
        out_shape=jax.ShapeDtypeStruct((rows, hp), jnp.float32),
        grid=(n_chunks,),
        in_specs=[
            pl.BlockSpec((rows_chunk, three_hp), lambda c: (c, 0)),
            pl.BlockSpec((hp, three_hp), lambda c: (0, 0)),
            pl.BlockSpec((1, hp), lambda c: (0, 0)),
        ],
        out_specs=pl.BlockSpec((rows_chunk, hp), lambda c: (c, 0)),
        scratch_shapes=[pltpu.VMEM((batch_p, hp), jnp.float32)],
        compiler_params=pltpu.CompilerParams(
            dimension_semantics=("arbitrary",),   # sequential recurrence carry
        ),
    )(gi, w_hh_p, b_hn_p)


# --------------------------------------------------------------------------
# Module wrapper
# --------------------------------------------------------------------------
class EncoderPallas:
    """JAX/Pallas equivalent of the PyTorch Encoder (Embedding + GRU)."""

    def __init__(self, vocab_size, embedding_dim, enc_units, batch_sz, key,
                 matmul_dtype=jnp.float32):
        self.vocab_size = vocab_size
        self.embedding_dim = embedding_dim
        self.enc_units = enc_units
        self.batch_sz = batch_sz
        self.matmul_dtype = matmul_dtype

        k_emb, k_wih, k_whh, k_bih, k_bhh = jax.random.split(key, 5)
        # nn.Embedding default init ~ N(0, 1)
        self.embedding = jax.random.normal(
            k_emb, (vocab_size, embedding_dim), dtype=jnp.float32)
        # nn.GRU default init ~ U(-1/sqrt(H), 1/sqrt(H)); gate order (r, z, n).
        s = 1.0 / np.sqrt(enc_units)
        # Stored transposed relative to PyTorch: (E, 3H) / (H, 3H).
        self.w_ih = jax.random.uniform(
            k_wih, (embedding_dim, 3 * enc_units), jnp.float32, -s, s)
        self.w_hh = jax.random.uniform(
            k_whh, (enc_units, 3 * enc_units), jnp.float32, -s, s)
        self.b_ih = jax.random.uniform(
            k_bih, (1, 3 * enc_units), jnp.float32, -s, s)
        self.b_hh = jax.random.uniform(
            k_bhh, (1, 3 * enc_units), jnp.float32, -s, s)

        # ---- Pre-packed, lane-aligned kernel parameters (built once). ----
        h = enc_units
        self.hp = _round_up(h, 128)                  # lane-dense gates/outputs
        # Fold the (r, z) parts of b_hh into b_ih; only b_hn stays in the loop.
        b_fold = self.b_ih.at[:, :2 * h].add(self.b_hh[:, :2 * h])
        # Zero-padded gate columns keep padded H lanes exactly zero, in f32
        # and bf16 alike (zero-in / zero-out invariant of the GRU update).
        self._w_ih_p = _pad_gate_cols(
            self.w_ih, h, self.hp).astype(matmul_dtype)               # (E, 3Hp)
        self._w_hh_p = _pad_gate_cols(
            jnp.pad(self.w_hh, ((0, self.hp - h), (0, 0))),
            h, self.hp).astype(matmul_dtype)                          # (Hp, 3Hp)
        self._b_ih_p = _pad_gate_cols(b_fold, h, self.hp)             # (1, 3Hp) f32
        self._b_hn_p = jnp.pad(self.b_hh[:, 2 * h:],
                               ((0, 0), (0, self.hp - h)))            # (1, Hp) f32
        self._emb_cast = self.embedding.astype(matmul_dtype)
        # TODO(synk): for H <= 42, pack all three gates into one 128-lane tile
        # instead of per-gate padding (recovers ~4x of per-step gate work).

    def __call__(self, x_ids, chunk_t=None):
        # x_ids: (T, B) int32 token ids (PyTorch GRU: seq-major, batch_first=False)
        t, b = x_ids.shape
        h, hp, e = self.enc_units, self.hp, self.embedding_dim

        # bf16 packs 16 rows per vreg; f32 packs 8.
        sub = 16 if self.matmul_dtype == jnp.bfloat16 else 8
        bp = _round_up(max(b, 1), sub)
        if chunk_t is None:
            chunk_t = _pick_chunk_t(t, bp, hp)
        t_pad = _round_up(t, chunk_t)

        # Pad the cheap int32 ids (batch cols + trailing timesteps) with a
        # valid token id instead of zero-padding the embedded f32 activation.
        # Padded batch rows never mix with real rows; padded timesteps come
        # after the real ones and are sliced off below.
        ids_p = jnp.pad(x_ids, ((0, t_pad - t), (0, bp - b)))
        # TODO(synk): fuse the embedding gather into the projection kernel via
        # scalar-prefetched ids + Element row-gather BlockSpec at large E/T/B.
        x_emb = jnp.take(self._emb_cast, ids_p, axis=0)          # (Tp, Bp, E)
        x2d = x_emb.reshape(t_pad * bp, e)

        # Kernel 1: parallel, row-tiled MXU matmul for all timesteps at once.
        gi = gi_projection(x2d, self._w_ih_p, self._b_ih_p,
                           rows_chunk=chunk_t * bp)              # (Tp*Bp, 3Hp) f32

        # Kernel 2: chunked serial recurrence, gi/out streamed per chunk,
        # hidden state carried in VMEM scratch across grid steps.
        out2d = gru_recurrence(gi, self._w_hh_p, self._b_hn_p,
                               chunk_t=chunk_t, batch_p=bp)      # (Tp*Bp, Hp)

        out3d = out2d.reshape(t_pad, bp, hp)
        output = out3d[:t, :b, :h]                               # (T, B, H)
        hidden = output[t - 1:t]                                 # (1, B, H)
        return output, hidden


# --------------------------------------------------------------------------
# Pure-JAX reference (PyTorch GRU semantics) for validation
# --------------------------------------------------------------------------
def _reference_gru(x_emb, w_ih, w_hh, b_ih, b_hh):
    t, b, e = x_emb.shape
    h_dim = w_hh.shape[0]
    h0 = jnp.zeros((b, h_dim), jnp.float32)

    def step(h, x):
        gi = x @ w_ih + b_ih
        gh = h @ w_hh + b_hh
        i_r, i_z, i_n = jnp.split(gi, 3, axis=-1)
        h_r, h_z, h_n = jnp.split(gh, 3, axis=-1)
        r = jax.nn.sigmoid(i_r + h_r)
        z = jax.nn.sigmoid(i_z + h_z)
        n = jnp.tanh(i_n + r * h_n)
        h_new = (1.0 - z) * n + z * h
        return h_new, h_new

    h_last, outs = lax.scan(step, h0, x_emb)
    return outs, h_last[None]


if __name__ == "__main__":
    # Small shapes consistent with the module's forward.
    vocab_size = 37
    embedding_dim = 32
    enc_units = 32
    batch_sz = 2
    seq_len = 8

    key = jax.random.PRNGKey(0)
    k_params, k_ids = jax.random.split(key)
    x_ids = jax.random.randint(k_ids, (seq_len, batch_sz), 0, vocab_size,
                               dtype=jnp.int32)

    # ---- f32 matmul path (tight validation). chunk_t=4 => 2 grid steps,
    # exercising the streamed-chunk + cross-chunk hidden-state carry. ----
    enc32 = EncoderPallas(vocab_size, embedding_dim, enc_units, batch_sz,
                          k_params, matmul_dtype=jnp.float32)
    out32, hid32 = jax.block_until_ready(enc32(x_ids, chunk_t=4))

    x_emb = jnp.take(enc32.embedding, x_ids, axis=0)
    ref_out, ref_hid = _reference_gru(x_emb, enc32.w_ih, enc32.w_hh,
                                      enc32.b_ih, enc32.b_hh)
    np.testing.assert_allclose(np.asarray(out32), np.asarray(ref_out),
                               rtol=1e-5, atol=1e-5)
    np.testing.assert_allclose(np.asarray(hid32), np.asarray(ref_hid),
                               rtol=1e-5, atol=1e-5)

    # ---- bf16 MXU operand path (v6e/v7x fast path; same weights, looser
    # tolerance against the f32 reference). ----
    enc16 = EncoderPallas(vocab_size, embedding_dim, enc_units, batch_sz,
                          k_params, matmul_dtype=jnp.bfloat16)
    out16, hid16 = jax.block_until_ready(enc16(x_ids, chunk_t=4))
    np.testing.assert_allclose(np.asarray(out16), np.asarray(ref_out),
                               rtol=5e-2, atol=5e-2)
    np.testing.assert_allclose(np.asarray(hid16), np.asarray(ref_hid),
                               rtol=5e-2, atol=5e-2)

    assert out32.shape == (seq_len, batch_sz, enc_units)
    assert hid32.shape == (1, batch_sz, enc_units)
    print("KERNEL_OK")
</pallas_src>

<mosaic_0001>
module attributes {stable_mosaic.version = 11 : i64} {
  func.func @_gi_projection_kernel(%arg0: i32, %arg1: memref<32x32xf32, #tpu.memory_space<vmem>>, %arg2: memref<32x384xf32, #tpu.memory_space<vmem>>, %arg3: memref<1x384xf32, #tpu.memory_space<vmem>>, %arg4: memref<32x384xf32, #tpu.memory_space<vmem>>) attributes {dimension_semantics = [#tpu.dimension_semantics<parallel>], iteration_bounds = array<i64: 2>, scalar_prefetch = 0 : i64, scratch_operands = 0 : i64, tpu.core_type = #tpu.core_type<tc>, window_params = [{transform_indices = @transform_0, window_bounds = array<i64: 32, 32>}, {pipeline_mode = #tpu.pipeline_mode<synchronous>, transform_indices = @transform_1, window_bounds = array<i64: 32, 384>}, {pipeline_mode = #tpu.pipeline_mode<synchronous>, transform_indices = @transform_2, window_bounds = array<i64: 1, 384>}, {transform_indices = @transform_3, window_bounds = array<i64: 32, 384>}]} {
    %c0 = arith.constant 0 : index
    %c0_0 = arith.constant 0 : index
    %0 = vector.load %arg1[%c0, %c0_0] : memref<32x32xf32, #tpu.memory_space<vmem>>, vector<32x32xf32>
    %c0_1 = arith.constant 0 : index
    %c0_2 = arith.constant 0 : index
    %1 = vector.load %arg2[%c0_1, %c0_2] : memref<32x384xf32, #tpu.memory_space<vmem>>, vector<32x384xf32>
    %cst = arith.constant dense<0.000000e+00> : vector<32x384xf32>
    %2 = tpu.matmul %0, %1, %cst {dimension_numbers = #tpu.dot_dimension_numbers<[1], [0], [0], [1], [0, 0, 1, 1], [], []>} : vector<32x32xf32>, vector<32x384xf32>, vector<32x384xf32> -> vector<32x384xf32>
    %c0_3 = arith.constant 0 : index
    %c0_4 = arith.constant 0 : index
    %3 = vector.load %arg3[%c0_3, %c0_4] : memref<1x384xf32, #tpu.memory_space<vmem>>, vector<1x384xf32>
    %4 = vector.broadcast %3 : vector<1x384xf32> to vector<32x384xf32>
    %5 = arith.addf %2, %4 : vector<32x384xf32>
    %c0_5 = arith.constant 0 : index
    %c0_6 = arith.constant 0 : index
    %6 = vector.load %arg4[%c0_5, %c0_6] : memref<32x384xf32, #tpu.memory_space<vmem>>, vector<32x384xf32>
    tpu.vector_store %arg4[%c0_5, %c0_6], %5 {strides = array<i32>} : memref<32x384xf32, #tpu.memory_space<vmem>>, vector<32x384xf32>,
    return
  }
  func.func @transform_0(%arg0: i32) -> (i32, i32) {
    %c0_i32 = arith.constant 0 : i32
    %c0_i32_0 = arith.constant 0 : i32
    return %arg0, %c0_i32 : i32, i32
  }
  func.func @transform_1(%arg0: i32) -> (i32, i32) {
    %c0_i32 = arith.constant 0 : i32
    %c0_i32_0 = arith.constant 0 : i32
    %c0_i32_1 = arith.constant 0 : i32
    return %c0_i32, %c0_i32_0 : i32, i32
  }
  func.func @transform_2(%arg0: i32) -> (i32, i32) {
    %c0_i32 = arith.constant 0 : i32
    %c0_i32_0 = arith.constant 0 : i32
    %c0_i32_1 = arith.constant 0 : i32
    return %c0_i32, %c0_i32_0 : i32, i32
  }
  func.func @transform_3(%arg0: i32) -> (i32, i32) {
    %c0_i32 = arith.constant 0 : i32
    %c0_i32_0 = arith.constant 0 : i32
    return %arg0, %c0_i32 : i32, i32
  }
}

</mosaic_0001>

<llo_original>
// kernel: tpu_custom_call.1
$region0: #{tpu_custom_call.1}
  #allocation0 [shape = 'u32[]', space=smem, size = 0x4, offset = 0x4, fixed_abs, tag = 'smem constant byte address 0x4 - core index']
  #allocation1 [shape = 'u32[144,128]{1,0:T(1,128)}', space=vmem, size = 0x12000, scoped, tag = 'internal scratch']
  %s0 = inlined_call_operand.vmem [shape: f32[64,32], index: 0, kind: input, shape index: {}]
  %s1 = inlined_call_operand.vmem [shape: f32[32,384], index: 1, kind: input, shape index: {}]
  %s2 = inlined_call_operand.vmem [shape: f32[1,384], index: 2, kind: input, shape index: {}]
  %s3 = inlined_call_operand.hbm [shape: f32[64,384], index: 3, kind: output, shape index: {}]
  %s4 = sld [smem:[#allocation0]]
  $region45: #{tpu_custom_call.1} parent=0
    _
  %s6 = ssub.s32 1, %s4
  %s7 = scalar_select 0, %s6, %s4
  $region1: #{tpu_custom_call.1} parent=0
    #allocation2 [shape = 'u8[98304]{0}', space=vmem, size = 0x18000, scoped, tag = 'output window, operand 0']
    #allocation3 [shape = 's32[2]{0}', space=sflag, size = 0x8, scoped, tag = 'scoped memory for tpu_custom_call.1']
    %8 = vsyncpa [#allocation3], 0
    %s9 = scalar_lea.sflag [#allocation3], 1
    %10 = vsyncpa %s9, 0
    loop: start=0, step=1, limit=4
    $region2: #{tpu_custom_call.1} parent=1 // loop_pre_header
      _
    $region3: #{tpu_custom_call.1} parent=1 // loop_header
      %s12 = sphi 0, %s16
      %p13 = scmp.ge.s32.totalorder %s12, 4
      %s22 = sphi 0, %s24
      %s25 = sphi 0, %s22
      %s26 = sphi 0, %s25
      %s42 = sphi 0, %s26
      %s46 = sphi 0, %s46
      %s48 = sphi 0, %s46
      %s49 = sphi 0, %s48
      %s63 = sphi 0, %s49
      %s67 = sphi 0, %s67
      %s69 = sphi 0, %s67
      %s70 = sphi 0, %s69
      %s84 = sphi 0, %s70
      %s90 = sphi 0, %s92
      %s93 = sphi 0, %s90
      %s94 = sphi 0, %s93
      %s110 = sphi 0, %s94
    $region4: #{tpu_custom_call.1} parent=1 // loop_header_branch
      %15 = sbr.rel (%p13) target = $region8
    $region5: #{tpu_custom_call.1} parent=1 // loop_body
      %s17 = ssub.s32 %s12, 1
      %s18 = ssub.s32 %s12, 2
      %s19 = sadd.s32 %s12, 1
      %s20 = ssub.s32 %s12, %s19
      %p21 = scmp.eq.s32.totalorder %s20, 0
      %s23 = sadd.s32 %s22, 1
      %s24 = scalar_select %p21, %s22, %s23
      %p27 = pneg %p21
      %p28 = scmp.eq.s32.totalorder %s12, 1
      %p29 = por %p27, %p28
      %p30 = scmp.ne.s32.totalorder %s22, %s25
      %p31 = scmp.eq.s32.totalorder %s12, 0
      %p32 = por %p30, %p31
      %p33 = scmp.ne.s32.totalorder %s22, %s25
      %p34 = scmp.eq.s32.totalorder %s17, 1
      %p35 = por %p33, %p34
      %p36 = scmp.ne.s32.totalorder %s25, %s26
      %p37 = scmp.eq.s32.totalorder %s17, 0
      %p38 = por %p36, %p37
      %p39 = scmp.ne.s32.totalorder %s25, %s26
      %p40 = scmp.eq.s32.totalorder %s18, 1
      %p41 = por %p39, %p40
      %p43 = scmp.ne.s32.totalorder %s26, %s42
      %p44 = scmp.eq.s32.totalorder %s18, 0
      %p45 = por %p43, %p44
      %s47 = sadd.s32 %s46, 1
      %p50 = scmp.eq.s32.totalorder %s12, 1
      %p51 = scmp.ne.s32.totalorder %s46, %s48
      %p52 = scmp.eq.s32.totalorder %s12, 0
      %p53 = por %p51, %p52
      %p54 = scmp.ne.s32.totalorder %s46, %s48
      %p55 = scmp.eq.s32.totalorder %s17, 1
      %p56 = por %p54, %p55
      %p57 = scmp.ne.s32.totalorder %s48, %s49
      %p58 = scmp.eq.s32.totalorder %s17, 0
      %p59 = por %p57, %p58
      %p60 = scmp.ne.s32.totalorder %s48, %s49
      %p61 = scmp.eq.s32.totalorder %s18, 1
      %p62 = por %p60, %p61
      %p64 = scmp.ne.s32.totalorder %s49, %s63
      %p65 = scmp.eq.s32.totalorder %s18, 0
      %p66 = por %p64, %p65
      %s68 = sadd.s32 %s67, 1
      %p71 = scmp.eq.s32.totalorder %s12, 1
      %p72 = scmp.ne.s32.totalorder %s67, %s69
      %p73 = scmp.eq.s32.totalorder %s12, 0
      %p74 = por %p72, %p73
      %p75 = scmp.ne.s32.totalorder %s67, %s69
      %p76 = scmp.eq.s32.totalorder %s17, 1
      %p77 = por %p75, %p76
      %p78 = scmp.ne.s32.totalorder %s69, %s70
      %p79 = scmp.eq.s32.totalorder %s17, 0
      %p80 = por %p78, %p79
      %p81 = scmp.ne.s32.totalorder %s69, %s70
      %p82 = scmp.eq.s32.totalorder %s18, 1
      %p83 = por %p81, %p82
      %p85 = scmp.ne.s32.totalorder %s70, %s84
      %p86 = scmp.eq.s32.totalorder %s18, 0
      %p87 = por %p85, %p86
      %s88 = ssub.s32 %s12, %s19
      %p89 = scmp.eq.s32.totalorder %s88, 0
      %s91 = sadd.s32 %s90, 1
      %s92 = scalar_select %p89, %s90, %s91
      %p95 = pneg %p89
      %p96 = scmp.eq.s32.totalorder %s12, 1
      %p97 = por %p95, %p96
      %p98 = scmp.ne.s32.totalorder %s90, %s93
      %p99 = scmp.eq.s32.totalorder %s12, 0
      %p100 = por %p98, %p99
      %p101 = scmp.ne.s32.totalorder %s90, %s93
      %p102 = scmp.eq.s32.totalorder %s17, 1
      %p103 = por %p101, %p102
      %p104 = scmp.ne.s32.totalorder %s93, %s94
      %p105 = scmp.eq.s32.totalorder %s17, 0
      %p106 = por %p104, %p105
      %p107 = scmp.ne.s32.totalorder %s93, %s94
      %p108 = scmp.eq.s32.totalorder %s18, 1
      %p109 = por %p107, %p108
      %p111 = scmp.ne.s32.totalorder %s94, %s110
      %p112 = scmp.eq.s32.totalorder %s18, 0
      %p113 = por %p111, %p112
      %p114 = scmp.le.s32.totalorder 1, %s12
      %p115 = scmp.lt.s32.totalorder %s12, 3
      %p116 = pnand %p114, %p115
      %p117 = pneg %p116
      // Predicated region
      $region9: #{tpu_custom_call.1} parent=5 // pred_check
        _
      $region10: #{tpu_custom_call.1} parent=5 // pred_check_branch
        %119 = sbr.rel (%p116) target = $region12
      $region11: #{tpu_custom_call.1} parent=5 // pred_region
        %s120 = ssub.s32 %s12, 1
        // Predicated region
        $region13: #{tpu_custom_call.1} parent=11 // pred_check
          %p121 = pneg %p59
        $region14: #{tpu_custom_call.1} parent=11 // pred_check_branch
          %123 = sbr.rel (%p121) target = $region16
        $region15: #{tpu_custom_call.1} parent=11 // pred_region
          _
        $region16: #{tpu_custom_call.1} parent=11 // pred_fallthru
          _
        // Predicated region
        $region17: #{tpu_custom_call.1} parent=11 // pred_check
          %p124 = pneg %p80
        $region18: #{tpu_custom_call.1} parent=11 // pred_check_branch
          %126 = sbr.rel (%p124) target = $region20
        $region19: #{tpu_custom_call.1} parent=11 // pred_region
          _
        $region20: #{tpu_custom_call.1} parent=11 // pred_fallthru
          _
      $region12: #{tpu_custom_call.1} parent=5 // pred_fallthru
        _
      %p127 = scmp.lt.s32.totalorder %s12, 2
      // Predicated region
      $region21: #{tpu_custom_call.1} parent=5 // pred_check
        %p128 = pneg %p127
      $region22: #{tpu_custom_call.1} parent=5 // pred_check_branch
        %130 = sbr.rel (%p128) target = $region24
      $region23: #{tpu_custom_call.1} parent=5 // pred_region
        // Predicated region
        $region25: #{tpu_custom_call.1} parent=23 // pred_check
          %p131 = pneg %p32
        $region26: #{tpu_custom_call.1} parent=23 // pred_check_branch
          %133 = sbr.rel (%p131) target = $region28
        $region27: #{tpu_custom_call.1} parent=23 // pred_region
          %s134 = smul.u32 4, %s12
          %p135 = scmp.lt.s32.totalorder %s134, 7
          %s136 = scalar_select %p135, %s134, 7
          %s137 = smul.addr %s136, 8
          %s138 = scalar_lea.vmem %s0, %s137
          %s139 = smul.u32 4, %s12
        $region28: #{tpu_custom_call.1} parent=23 // pred_fallthru
          _
      $region24: #{tpu_custom_call.1} parent=5 // pred_fallthru
        _
      %p140 = scmp.le.s32.totalorder 1, %s12
      %p141 = scmp.lt.s32.totalorder %s12, 3
      %p142 = pnand %p140, %p141
      %p143 = pneg %p142
      // Predicated region
      $region29: #{tpu_custom_call.1} parent=5 // pred_check
        _
      $region30: #{tpu_custom_call.1} parent=5 // pred_check_branch
        %145 = sbr.rel (%p142) target = $region32
      $region31: #{tpu_custom_call.1} parent=5 // pred_region
        %s146 = ssub.s32 %s12, 1
        %s147 = smul.u32 4, %s17
        %p148 = scmp.lt.s32.totalorder %s147, 7
        %s149 = scalar_select %p148, %s147, 7
        %s150 = smul.addr %s149, 8
        %s151 = scalar_lea.vmem %s0, %s150
        %p152 = pneg %p38
        %p153 = pneg %p35
        %p154 = pneg %p59
        %p155 = pneg %p56
        %p156 = pneg %p80
        %p157 = pneg %p77
        %p158 = pneg %p106
        %p159 = pneg %p103
        %s160 = sand.u32 %s93, 1
        %s161 = scalar_lea.sflag [#allocation3], %s160
        %s162 = sand.u32 %s93, 1
        %s163 = smul.addr %s162, 96
        %s164 = scalar_lea.vmem [#allocation2], %s163
        %s165 = smul.u32 4, %s17
        %p166 = scmp.lt.s32.totalorder %s165, 7
        %s167 = scalar_select %p166, %s165, 7
        %s168 = smul.addr %s167, 8
        %s169 = scalar_lea.vmem %s0, %s168
        %s170 = smul.u32 4, %s17
        %s171 = smul.u32 4, %s17
        %v172 = vld [vmem:[%s169] sm:$0xff]
        %v173 = vld [vmem:[%s169 + $0x8] sm:$0xff]
        %v174 = vld [vmem:[%s169 + $0x10] sm:$0xff]
        %v175 = vld [vmem:[%s169 + $0x18] sm:$0xff]
        %v176 = vld [vmem:[%s1] sm:$0xff]
        %v177 = vld [vmem:[%s1 + $0x8] sm:$0xff]
        %v178 = vld [vmem:[%s1 + $0x10] sm:$0xff]
        %v179 = vld [vmem:[%s1 + $0x18] sm:$0xff]
        %v180 = vld [vmem:[%s1 + $0x20] sm:$0xff]
        %v181 = vld [vmem:[%s1 + $0x28] sm:$0xff]
        %v182 = vld [vmem:[%s1 + $0x30] sm:$0xff]
        %v183 = vld [vmem:[%s1 + $0x38] sm:$0xff]
        %v184 = vld [vmem:[%s1 + $0x40] sm:$0xff]
        %v185 = vld [vmem:[%s1 + $0x48] sm:$0xff]
        %v186 = vld [vmem:[%s1 + $0x50] sm:$0xff]
        %v187 = vld [vmem:[%s1 + $0x58] sm:$0xff]
        %v188 = vld [vmem:[%s2] sm:$0x7]
        %v190 = vlaneseq
        %v191 = vshrl.u32 %v190, 7
        %v192 = vsub.s32 0, %v191
        %v193 = vrot.slane %v188, %v192
        %v194 = vlaneseq
        %v195 = vshrl.u32 %v194, 7
        %v196 = vsub.s32 1, %v195
        %v197 = vrot.slane %v188, %v196
        %v198 = vlaneseq
        %v199 = vshrl.u32 %v198, 7
        %v200 = vsub.s32 2, %v199
        %v201 = vrot.slane %v188, %v200
        %vm205 = vcmask 261120
        %v207 = vsel %vm205, %v172, 0
        %v210 = vsel %vm205, %v173, 0
        %v213 = vsel %vm205, %v174, 0
        %v216 = vsel %vm205, %v175, 0
        %218 = vmatprep.subr.mxu0 %v177
        %219 = vmatpush1.msra.mxu0 %v176
        %220 = vmatprep.subr.mxu0 %v180
        %221 = vmatpush1.msra.mxu0 %v179
        %222 = vmatprep.subr.mxu0 %v183
        %223 = vmatpush1.msra.mxu0 %v182
        %224 = vmatprep.subr.mxu0 %v186
        %225 = vmatpush1.msra.mxu0 %v185
        %226 = vmatprep.subr.mxu0 0.0
        %227 = vmatpush1.msra.mxu0 0.0
        %228 = vmatprep.subr.mxu0 0.0
        %229 = vmatpush1.msra.mxu0 0.0
        %230 = vmatprep.subr.mxu0 0.0
        %231 = vmatpush1.msra.mxu0 0.0
        %232 = vmatprep.subr.mxu0 0.0
        %233 = vmatpush1.msra.mxu0 0.0
        %234 = vmatprep.subr.mxu0 0.0
        %235 = vmatpush1.msra.mxu0 0.0
        %236 = vmatprep.subr.mxu0 0.0
        %237 = vmatpush1.msra.mxu0 0.0
        %238 = vmatprep.subr.mxu0 0.0
        %239 = vmatpush1.msra.mxu0 0.0
        %240 = vmatprep.subr.mxu0 0.0
        %241 = vmatpush1.msra.mxu0 0.0
        %242 = vmatprep.subr.mxu0 0.0
        %243 = vmatpush1.msra.mxu0 0.0
        %244 = vmatprep.subr.mxu0 0.0
        %245 = vmatpush1.msra.mxu0 0.0
        %246 = vmatprep.subr.mxu0 0.0
        %247 = vmatpush1.msra.mxu0 0.0
        %248 = vmatprep.subr.mxu0 0.0
        %249 = vmatpush1.msra.mxu0 0.0
        %250 = vmatprep.subr.mxu0 0.0
        %251 = vmatpush1.msra.mxu0 0.0
        %252 = vmatprep.subr.mxu0 0.0
        %253 = vmatpush1.msra.mxu0 0.0
        %254 = vmatprep.subr.mxu0 0.0
        %255 = vmatpush1.msra.mxu0 0.0
        %256 = vmatprep.subr.mxu0 0.0
        %257 = vmatpush1.msra.mxu0 0.0
        %258 = vmatprep.subr.mxu0 0.0
        %259 = vmatpush1.msra.mxu0 0.0
        %260 = vmatprep.subr.mxu0 0.0
        %261 = vmatpush1.msra.mxu0 0.0
        %262 = vmatprep.subr.mxu0 0.0
        %263 = vmatpush1.msra.mxu0 0.0
        %264 = vmatprep.subr.mxu0 0.0
        %265 = vmatpush1.msra.mxu0 0.0
        %266 = vmatprep.subr.mxu0 0.0
        %267 = vmatpush1.msra.mxu0 0.0
        %268 = vmatprep.subr.mxu0 0.0
        %269 = vmatpush1.msra.mxu0 0.0
        %270 = vmatprep.subr.mxu0 0.0
        %271 = vmatpush1.msra.mxu0 0.0
        %272 = vmatprep.subr.mxu0 0.0
        %273 = vmatpush1.msra.mxu0 0.0
        %274 = vmatprep.subr.mxu0 0.0
        %275 = vmatpush1.msra.mxu0 0.0
        %276 = vmatprep.subr.mxu0 0.0
        %277 = vmatpush1.msra.mxu0 0.0
        %278 = vmatprep.subr.mxu0 0.0
        %279 = vmatpush1.msra.mxu0 0.0
        %280 = vmatprep.subr.mxu0 0.0
        %281 = vmatpush1.msra.mxu0 0.0
        %282 = vmatprep.mubr.f32.mxu0 0.0
        %283 = vmatmul.mubr.f32.gmra.mrb[0].mxu0 %v207
        %v284 = vpop.f32.mrb[0].mxu0
        %v285 = vadd.f32 %v193, %v284
        %v286 = vpop.f32.mrb[0].mxu0
        %v287 = vadd.f32 %v197, %v286
        %288 = vmatprep.mubr.f32.mxu0 0.0
        %289 = vmatmul.mubr.f32.gmra.mrb[0].mxu0 %v210
        %v290 = vpop.f32.mrb[0].mxu0
        %v291 = vadd.f32 %v193, %v290
        %v292 = vpop.f32.mrb[0].mxu0
        %v293 = vadd.f32 %v197, %v292
        %294 = vmatprep.mubr.f32.mxu0 0.0
        %295 = vmatmul.mubr.f32.gmra.mrb[0].mxu0 %v213
        %v296 = vpop.f32.mrb[0].mxu0
        %v297 = vadd.f32 %v193, %v296
        %v298 = vpop.f32.mrb[0].mxu0
        %v299 = vadd.f32 %v197, %v298
        %300 = vmatprep.mubr.f32.mxu0 0.0
        %301 = vmatmul.mubr.f32.gmra.mrb[0].mxu0 %v216
        %v302 = vpop.f32.mrb[0].mxu0
        %v303 = vadd.f32 %v193, %v302
        %v304 = vpop.f32.mrb[0].mxu0
        %v305 = vadd.f32 %v197, %v304
        %306 = vdwg.mxu0
        %307 = vmatprep.subr.mxu0 0.0
        %308 = vmatpush1.msra.mxu0 %v178
        %309 = vmatprep.subr.mxu0 0.0
        %310 = vmatpush1.msra.mxu0 %v181
        %311 = vmatprep.subr.mxu0 0.0
        %312 = vmatpush1.msra.mxu0 %v184
        %313 = vmatprep.subr.mxu0 0.0
        %314 = vmatpush1.msra.mxu0 %v187
        %315 = vmatprep.subr.mxu0 0.0
        %316 = vmatpush1.msra.mxu0 0.0
        %317 = vmatprep.subr.mxu0 0.0
        %318 = vmatpush1.msra.mxu0 0.0
        %319 = vmatprep.subr.mxu0 0.0
        %320 = vmatpush1.msra.mxu0 0.0
        %321 = vmatprep.subr.mxu0 0.0
        %322 = vmatpush1.msra.mxu0 0.0
        %323 = vmatprep.subr.mxu0 0.0
        %324 = vmatpush1.msra.mxu0 0.0
        %325 = vmatprep.subr.mxu0 0.0
        %326 = vmatpush1.msra.mxu0 0.0
        %327 = vmatprep.subr.mxu0 0.0
        %328 = vmatpush1.msra.mxu0 0.0
        %329 = vmatprep.subr.mxu0 0.0
        %330 = vmatpush1.msra.mxu0 0.0
        %331 = vmatprep.subr.mxu0 0.0
        %332 = vmatpush1.msra.mxu0 0.0
        %333 = vmatprep.subr.mxu0 0.0
        %334 = vmatpush1.msra.mxu0 0.0
        %335 = vmatprep.subr.mxu0 0.0
        %336 = vmatpush1.msra.mxu0 0.0
        %337 = vmatprep.subr.mxu0 0.0
        %338 = vmatpush1.msra.mxu0 0.0
        %339 = vmatprep.subr.mxu0 0.0
        %340 = vmatpush1.msra.mxu0 0.0
        %341 = vmatprep.subr.mxu0 0.0
        %342 = vmatpush1.msra.mxu0 0.0
        %343 = vmatprep.subr.mxu0 0.0
        %344 = vmatpush1.msra.mxu0 0.0
        %345 = vmatprep.subr.mxu0 0.0
        %346 = vmatpush1.msra.mxu0 0.0
        %347 = vmatprep.subr.mxu0 0.0
        %348 = vmatpush1.msra.mxu0 0.0
        %349 = vmatprep.subr.mxu0 0.0
        %350 = vmatpush1.msra.mxu0 0.0
        %351 = vmatprep.subr.mxu0 0.0
        %352 = vmatpush1.msra.mxu0 0.0
        %353 = vmatprep.subr.mxu0 0.0
        %354 = vmatpush1.msra.mxu0 0.0
        %355 = vmatprep.subr.mxu0 0.0
        %356 = vmatpush1.msra.mxu0 0.0
        %357 = vmatprep.subr.mxu0 0.0
        %358 = vmatpush1.msra.mxu0 0.0
        %359 = vmatprep.subr.mxu0 0.0
        %360 = vmatpush1.msra.mxu0 0.0
        %361 = vmatprep.subr.mxu0 0.0
        %362 = vmatpush1.msra.mxu0 0.0
        %363 = vmatprep.subr.mxu0 0.0
        %364 = vmatpush1.msra.mxu0 0.0
        %365 = vmatprep.subr.mxu0 0.0
        %366 = vmatpush1.msra.mxu0 0.0
        %367 = vmatprep.subr.mxu0 0.0
        %368 = vmatpush1.msra.mxu0 0.0
        %369 = vmatprep.subr.mxu0 0.0
        %370 = vmatpush1.msra.mxu0 0.0
        %371 = vmatprep.mubr.f32.mxu0 0.0
        %372 = vmatmul.mubr.f32.gmra.mrb[0].mxu0 %v207
        %v373 = vpop.f32.mrb[0].mxu0
        %v374 = vadd.f32 %v201, %v373
        %v375 = vpop.f32.mrb[0].mxu0
        %376 = vmatprep.mubr.f32.mxu0 0.0
        %377 = vmatmul.mubr.f32.gmra.mrb[0].mxu0 %v210
        %v378 = vpop.f32.mrb[0].mxu0
        %v379 = vadd.f32 %v201, %v378
        %v380 = vpop.f32.mrb[0].mxu0
        %381 = vmatprep.mubr.f32.mxu0 0.0
        %382 = vmatmul.mubr.f32.gmra.mrb[0].mxu0 %v213
        %v383 = vpop.f32.mrb[0].mxu0
        %v384 = vadd.f32 %v201, %v383
        %v385 = vpop.f32.mrb[0].mxu0
        %386 = vmatprep.mubr.f32.mxu0 0.0
        %387 = vmatmul.mubr.f32.gmra.mrb[0].mxu0 %v216
        %v388 = vpop.f32.mrb[0].mxu0
        %v389 = vadd.f32 %v201, %v388
        %v390 = vpop.f32.mrb[0].mxu0
        %391 = vdwg.mxu0
        %392 = vst [vmem:[%s164] sm:$0xff] %v285
        %393 = vst [vmem:[%s164 + $0x8] sm:$0xff] %v287
        %394 = vst [vmem:[%s164 + $0x10] sm:$0xff] %v374
        %395 = vst [vmem:[%s164 + $0x18] sm:$0xff] %v291
        %396 = vst [vmem:[%s164 + $0x20] sm:$0xff] %v293
        %397 = vst [vmem:[%s164 + $0x28] sm:$0xff] %v379
        %398 = vst [vmem:[%s164 + $0x30] sm:$0xff] %v297
        %399 = vst [vmem:[%s164 + $0x38] sm:$0xff] %v299
        %400 = vst [vmem:[%s164 + $0x40] sm:$0xff] %v384
        %401 = vst [vmem:[%s164 + $0x48] sm:$0xff] %v303
        %402 = vst [vmem:[%s164 + $0x50] sm:$0xff] %v305
        %403 = vst [vmem:[%s164 + $0x58] sm:$0xff] %v389
        %s404 = sand.u32 %s93, 1
        %s405 = scalar_lea.sflag [#allocation3], %s404
        %s406 = sand.u32 %s93, 1
        %s407 = smul.addr %s406, 96
        %s408 = scalar_lea.vmem [#allocation2], %s407
        // Predicated region
        $region33: #{tpu_custom_call.1} parent=31 // pred_check
          %p409 = pneg %p103
        $region34: #{tpu_custom_call.1} parent=31 // pred_check_branch
          %411 = sbr.rel (%p409) target = $region36
        $region35: #{tpu_custom_call.1} parent=31 // pred_region
          %s412 = smul.u32 4, %s17
          %s414 = ssub.s32 1536, 1536
          %415 = vsyncadd %s405, %s414
          %s416 = smul.addr %s412, 3
          %s417 = smul.addr %s416, 128
          %s418 = scalar_lea.hbm %s3, %s417
          %s419 = sshll.u32 %s408, 4
          %s420 = int_to_ptr.vmem [resolvable:$true] %s419
          %425 = dma.vmem_to_hbm [thread:$0]  %s420, 1536, %s418, %s405, 384, 384, 24
        $region36: #{tpu_custom_call.1} parent=31 // pred_fallthru
          _
      $region32: #{tpu_custom_call.1} parent=5 // pred_fallthru
        _
      %p426 = scmp.le.s32.totalorder 2, %s12
      // Predicated region
      $region37: #{tpu_custom_call.1} parent=5 // pred_check
        %p427 = pneg %p426
      $region38: #{tpu_custom_call.1} parent=5 // pred_check_branch
        %429 = sbr.rel (%p427) target = $region40
      $region39: #{tpu_custom_call.1} parent=5 // pred_region
        %s430 = ssub.s32 %s12, 2
        // Predicated region
        $region41: #{tpu_custom_call.1} parent=39 // pred_check
          %p431 = pneg %p109
        $region42: #{tpu_custom_call.1} parent=39 // pred_check_branch
          %433 = sbr.rel (%p431) target = $region44
        $region43: #{tpu_custom_call.1} parent=39 // pred_region
          %s434 = sand.u32 %s94, 1
          %s435 = scalar_lea.sflag [#allocation3], %s434
          %s436 = sand.u32 %s94, 1
          %s437 = smul.addr %s436, 96
          %s438 = scalar_lea.vmem [#allocation2], %s437
          %439 = dma.done %s435, 1536
        $region44: #{tpu_custom_call.1} parent=39 // pred_fallthru
          _
      $region40: #{tpu_custom_call.1} parent=5 // pred_fallthru
        _
    $region6: #{tpu_custom_call.1} parent=1 // loop_footer
      %s16 = sadd.s32 1, %s12
    $region7: #{tpu_custom_call.1} parent=1 // loop_footer_branch
      %11 = sbr.rel target = $region3
    $region8: #{tpu_custom_call.1} parent=1 // loop_exit
      _
    %440 = vsyncpa [#allocation3], 1
    %s441 = scalar_lea.sflag [#allocation3], 1
    %442 = vsyncpa %s441, 1

</llo_original>
